<compile_context>
chip_gen: v5e
topology: v5e:2x2
jax: 0.10.0
libtpu: 0.0.40
codegen_flags: <defaults>
</compile_context>

<pallas_src>
import jax
import jax.numpy as jnp
from jax import lax
from jax.experimental import pallas as pl
from jax.experimental.pallas import tpu as pltpu

BN_EPS = 1e-5
_LANE = 128
_SUBLANE = 8


def _cdiv(a, b):
    return -(-a // b)


def _round_up(x, m):
    return _cdiv(x, m) * m


# ----------------------------- Pallas kernel ------------------------------ #
def _gemm_bias_relu_kernel(p_ref, w_ref, b_ref, o_ref):
    """One (tm, Np) output tile: relu(p @ w + b), f32 accumulation/epilogue.

    p_ref: (tm, Kp)  im2col patches (compute dtype, e.g. bf16)
    w_ref: (Kp, Np)  conv weights with the BatchNorm scale pre-folded in
    b_ref: (1,  Np)  folded BatchNorm bias (f32)
    o_ref: (tm, Np)  output tile (lane-dense: Np is a multiple of 128)
    """
    acc = jnp.dot(p_ref[...], w_ref[...], preferred_element_type=jnp.float32)
    acc = acc + b_ref[...]
    o_ref[...] = jnp.maximum(acc, 0.0).astype(o_ref.dtype)


def fused_conv_gemm(patches, w_mat, scale, bias, *,
                    compute_dtype=jnp.bfloat16,
                    out_dtype=jnp.float32,
                    target_tile_m=1024):
    """relu(patches @ (w_mat * scale) + bias) with TPU-friendly padding.

    patches: (M, K); w_mat: (K, Cout); scale/bias: (Cout,).
    Returns (M, Cout) in out_dtype.
    """
    M, K = patches.shape
    K2, Cout = w_mat.shape
    assert K == K2

    # Fold BatchNorm scale into the weights (kernel epilogue = bias + ReLU).
    w_eff = w_mat.astype(jnp.float32) * scale[None, :].astype(jnp.float32)

    # Pad N (Cout) to a full 128-lane multiple: lane-dense, unmasked stores.
    Np = _round_up(Cout, _LANE)
    # Pad K to a sublane multiple only (padding to 128 would inflate the
    # memory-bound patches read by Kp/K).
    Kp = _round_up(K, _SUBLANE)

    # Tile M: big tiles for deep DMA pipelining, cdiv grid with zero-padded
    # remainder; >= 2 blocks so both v7x TensorCores get work.
    nblocks = _cdiv(M, target_tile_m)
    if nblocks < 2 and M > _SUBLANE:
        nblocks = 2
    nblocks = max(nblocks, 1)
    tm = _round_up(_cdiv(M, nblocks), _SUBLANE)
    Mp = tm * nblocks

    p_pad = jnp.pad(patches, ((0, Mp - M), (0, Kp - K))).astype(compute_dtype)
    w_pad = jnp.pad(w_eff, ((0, Kp - K), (0, Np - Cout))).astype(compute_dtype)
    b_pad = jnp.pad(bias.astype(jnp.float32), (0, Np - Cout)).reshape(1, Np)

    out = pl.pallas_call(
        _gemm_bias_relu_kernel,
        out_shape=jax.ShapeDtypeStruct((Mp, Np), out_dtype),
        grid=(nblocks,),
        in_specs=[
            pl.BlockSpec((tm, Kp), lambda i: (i, 0)),
            pl.BlockSpec((Kp, Np), lambda i: (0, 0)),  # constant index -> stays resident
            pl.BlockSpec((1, Np), lambda i: (0, 0)),
        ],
        out_specs=pl.BlockSpec((tm, Np), lambda i: (i, 0)),
        compiler_params=pltpu.CompilerParams(
            dimension_semantics=("parallel",),
            vmem_limit_bytes=32 * 1024 * 1024,
        ),
    )(p_pad, w_pad, b_pad)
    return out[:M, :Cout]


# ------------------------------- glue (JAX) -------------------------------- #
def im2col(x_nhwc, k, stride, pad):
    """x_nhwc: (N,H,W,C) -> patches (N*Ho*Wo, k*k*C); patch order (di, dj, c)."""
    x = jnp.pad(x_nhwc, ((0, 0), (pad, pad), (pad, pad), (0, 0)))
    N, Hp, Wp, C = x.shape
    Ho = (Hp - k) // stride + 1
    Wo = (Wp - k) // stride + 1
    cols = []
    for di in range(k):
        for dj in range(k):
            cols.append(x[:, di:di + stride * Ho:stride,
                          dj:dj + stride * Wo:stride, :])
    patches = jnp.stack(cols, axis=3)          # (N, Ho, Wo, k*k, C)
    return patches.reshape(N * Ho * Wo, k * k * C), (N, Ho, Wo)


def fold_bn(gamma, beta, running_mean, running_var, eps=BN_EPS):
    scale = gamma / jnp.sqrt(running_var + eps)
    bias = beta - running_mean * scale
    return scale, bias


def flatten_conv_weight(w_oihw):
    """PyTorch (Cout, Cin, k, k) -> (k*k*Cin, Cout), matching im2col order."""
    return jnp.transpose(w_oihw, (2, 3, 1, 0)).reshape(-1, w_oihw.shape[0])


def conv2x_forward(x_nchw, rem_nchw, params, compute_dtype=jnp.bfloat16):
    x = jnp.transpose(x_nchw, (0, 2, 3, 1))      # NHWC
    rem = jnp.transpose(rem_nchw, (0, 2, 3, 1))  # NHWC

    # conv1: k=3, s=2, p=1, BN(eval) + ReLU fused in kernel; bf16 intermediate.
    p1, (N, Ho, Wo) = im2col(x, k=3, stride=2, pad=1)
    w1 = flatten_conv_weight(params["w1"])
    s1, b1 = fold_bn(params["g1"], params["be1"], params["rm1"], params["rv1"])
    y1 = fused_conv_gemm(p1, w1, s1, b1, compute_dtype=compute_dtype,
                         out_dtype=compute_dtype).reshape(N, Ho, Wo, -1)

    # concat([conv1(x), rem], channel) — kept in compute dtype to halve traffic.
    y = jnp.concatenate([y1, rem.astype(compute_dtype)], axis=-1)

    # conv2: k=3, s=1, p=1, BN(eval) + ReLU fused in kernel.
    p2, _ = im2col(y, k=3, stride=1, pad=1)
    w2 = flatten_conv_weight(params["w2"])
    s2, b2 = fold_bn(params["g2"], params["be2"], params["rm2"], params["rv2"])
    y2 = fused_conv_gemm(p2, w2, s2, b2, compute_dtype=compute_dtype,
                         out_dtype=jnp.float32).reshape(N, Ho, Wo, -1)

    return jnp.transpose(y2, (0, 3, 1, 2))       # back to NCHW


# ------------------------- pure-JAX reference check ------------------------ #
def _quantize(x, dtype):
    return x.astype(dtype).astype(jnp.float32)


def _ref_conv_scaled(x_nhwc, w_oihw, scale, bias, stride, pad, compute_dtype):
    # Module math (Conv -> BN(eval) -> ReLU) with the BN scale folded into the
    # weights, evaluated at the kernel's compute precision.
    w_hwio = jnp.transpose(w_oihw, (2, 3, 1, 0)) * scale
    y = lax.conv_general_dilated(
        _quantize(x_nhwc, compute_dtype), _quantize(w_hwio, compute_dtype),
        window_strides=(stride, stride),
        padding=((pad, pad), (pad, pad)),
        dimension_numbers=("NHWC", "HWIO", "NHWC"),
        preferred_element_type=jnp.float32,
        precision=lax.Precision.HIGHEST)
    return jnp.maximum(y + bias, 0.0)


def conv2x_reference(x_nchw, rem_nchw, params, compute_dtype=jnp.bfloat16):
    x = jnp.transpose(x_nchw, (0, 2, 3, 1))
    rem = jnp.transpose(rem_nchw, (0, 2, 3, 1))
    s1, b1 = fold_bn(params["g1"], params["be1"], params["rm1"], params["rv1"])
    y1 = _ref_conv_scaled(x, params["w1"], s1, b1, 2, 1, compute_dtype)
    y1 = _quantize(y1, compute_dtype)            # kernel stores y1 in bf16
    y = jnp.concatenate([y1, _quantize(rem, compute_dtype)], axis=-1)
    s2, b2 = fold_bn(params["g2"], params["be2"], params["rm2"], params["rv2"])
    y2 = _ref_conv_scaled(y, params["w2"], s2, b2, 1, 1, compute_dtype)
    return jnp.transpose(y2, (0, 3, 1, 2))


# ---------------------------------- main ----------------------------------- #
if __name__ == "__main__":
    key = jax.random.PRNGKey(0)
    kx, kr, kw1, kw2, kg1, kg2, kb1, kb2, km1, km2, kv1, kv2 = \
        jax.random.split(key, 12)

    N, Cin, H, W = 2, 4, 16, 16
    Cout = 8
    Ho, Wo = H // 2, W // 2

    x = jax.random.normal(kx, (N, Cin, H, W), jnp.float32)       # NCHW
    rem = jax.random.normal(kr, (N, Cout, Ho, Wo), jnp.float32)  # NCHW

    params = {
        # conv1: Conv2d(Cin, Cout, k=3, s=2, p=1, bias=False)
        "w1": 0.1 * jax.random.normal(kw1, (Cout, Cin, 3, 3), jnp.float32),
        "g1": 1.0 + 0.1 * jax.random.normal(kg1, (Cout,), jnp.float32),
        "be1": 0.1 * jax.random.normal(kb1, (Cout,), jnp.float32),
        "rm1": 0.1 * jax.random.normal(km1, (Cout,), jnp.float32),
        "rv1": 1.0 + 0.1 * jax.nn.softplus(jax.random.normal(kv1, (Cout,))),
        # conv2: Conv2d(2*Cout, Cout, k=3, s=1, p=1, bias=False)
        "w2": 0.1 * jax.random.normal(kw2, (Cout, 2 * Cout, 3, 3), jnp.float32),
        "g2": 1.0 + 0.1 * jax.random.normal(kg2, (Cout,), jnp.float32),
        "be2": 0.1 * jax.random.normal(kb2, (Cout,), jnp.float32),
        "rm2": 0.1 * jax.random.normal(km2, (Cout,), jnp.float32),
        "rv2": 1.0 + 0.1 * jax.nn.softplus(jax.random.normal(kv2, (Cout,))),
    }

    out = jax.jit(conv2x_forward)(x, rem, params)
    out = jax.block_until_ready(out)
    assert out.shape == (N, Cout, Ho, Wo), out.shape

    # Reference is the exact module math evaluated at the same (bf16 input /
    # f32 accumulate) precision the kernel deliberately uses for bandwidth,
    # so the comparison stays tight.
    ref = jax.block_until_ready(conv2x_reference(x, rem, params))
    assert jnp.allclose(out, ref, rtol=1e-3, atol=1e-3), \
        float(jnp.max(jnp.abs(out - ref)))

    print("KERNEL_OK")
</pallas_src>

<mosaic_0001>
module attributes {stable_mosaic.version = 11 : i64} {
  func.func @_gemm_bias_relu_kernel(%arg0: i32, %arg1: memref<64x40xbf16, #tpu.memory_space<vmem>>, %arg2: memref<40x128xbf16, #tpu.memory_space<vmem>>, %arg3: memref<1x128xf32, #tpu.memory_space<vmem>>, %arg4: memref<64x128xbf16, #tpu.memory_space<vmem>>) attributes {dimension_semantics = [#tpu.dimension_semantics<parallel>], iteration_bounds = array<i64: 2>, scalar_prefetch = 0 : i64, scratch_operands = 0 : i64, tpu.core_type = #tpu.core_type<tc>, window_params = [{transform_indices = @transform_0, window_bounds = array<i64: 64, 40>}, {pipeline_mode = #tpu.pipeline_mode<synchronous>, transform_indices = @transform_1, window_bounds = array<i64: 40, 128>}, {pipeline_mode = #tpu.pipeline_mode<synchronous>, transform_indices = @transform_2, window_bounds = array<i64: 1, 128>}, {transform_indices = @transform_3, window_bounds = array<i64: 64, 128>}]} {
    %c0 = arith.constant 0 : index
    %c0_0 = arith.constant 0 : index
    %0 = vector.load %arg1[%c0, %c0_0] : memref<64x40xbf16, #tpu.memory_space<vmem>>, vector<64x40xbf16>
    %c0_1 = arith.constant 0 : index
    %c0_2 = arith.constant 0 : index
    %1 = vector.load %arg2[%c0_1, %c0_2] : memref<40x128xbf16, #tpu.memory_space<vmem>>, vector<40x128xbf16>
    %cst = arith.constant dense<0.000000e+00> : vector<64x128xf32>
    %2 = tpu.matmul %0, %1, %cst {dimension_numbers = #tpu.dot_dimension_numbers<[1], [0], [0], [1], [0, 0, 1, 1], [], []>} : vector<64x40xbf16>, vector<40x128xbf16>, vector<64x128xf32> -> vector<64x128xf32>
    %c0_3 = arith.constant 0 : index
    %c0_4 = arith.constant 0 : index
    %3 = vector.load %arg3[%c0_3, %c0_4] : memref<1x128xf32, #tpu.memory_space<vmem>>, vector<1x128xf32>
    %4 = vector.broadcast %3 : vector<1x128xf32> to vector<64x128xf32>
    %5 = arith.addf %2, %4 : vector<64x128xf32>
    %cst_5 = arith.constant 0.000000e+00 : f32
    %6 = vector.broadcast %cst_5 : f32 to vector<64x128xf32>
    %7 = arith.maximumf %5, %6 : vector<64x128xf32>
    %8 = arith.truncf %7 : vector<64x128xf32> to vector<64x128xbf16>
    %c0_6 = arith.constant 0 : index
    %c0_7 = arith.constant 0 : index
    %9 = vector.load %arg4[%c0_6, %c0_7] : memref<64x128xbf16, #tpu.memory_space<vmem>>, vector<64x128xbf16>
    tpu.vector_store %arg4[%c0_6, %c0_7], %8 {strides = array<i32>} : memref<64x128xbf16, #tpu.memory_space<vmem>>, vector<64x128xbf16>,
    return
  }
  func.func @transform_0(%arg0: i32) -> (i32, i32) {
    %c0_i32 = arith.constant 0 : i32
    %c0_i32_0 = arith.constant 0 : i32
    return %arg0, %c0_i32 : i32, i32
  }
  func.func @transform_1(%arg0: i32) -> (i32, i32) {
    %c0_i32 = arith.constant 0 : i32
    %c0_i32_0 = arith.constant 0 : i32
    %c0_i32_1 = arith.constant 0 : i32
    return %c0_i32, %c0_i32_0 : i32, i32
  }
  func.func @transform_2(%arg0: i32) -> (i32, i32) {
    %c0_i32 = arith.constant 0 : i32
    %c0_i32_0 = arith.constant 0 : i32
    %c0_i32_1 = arith.constant 0 : i32
    return %c0_i32, %c0_i32_0 : i32, i32
  }
  func.func @transform_3(%arg0: i32) -> (i32, i32) {
    %c0_i32 = arith.constant 0 : i32
    %c0_i32_0 = arith.constant 0 : i32
    return %arg0, %c0_i32 : i32, i32
  }
}

module attributes {stable_mosaic.version = 11 : i64} {
  func.func @_gemm_bias_relu_kernel(%arg0: i32, %arg1: memref<64x144xbf16, #tpu.memory_space<vmem>>, %arg2: memref<144x128xbf16, #tpu.memory_space<vmem>>, %arg3: memref<1x128xf32, #tpu.memory_space<vmem>>, %arg4: memref<64x128xf32, #tpu.memory_space<vmem>>) attributes {dimension_semantics = [#tpu.dimension_semantics<parallel>], iteration_bounds = array<i64: 2>, scalar_prefetch = 0 : i64, scratch_operands = 0 : i64, tpu.core_type = #tpu.core_type<tc>, window_params = [{transform_indices = @transform_0, window_bounds = array<i64: 64, 144>}, {pipeline_mode = #tpu.pipeline_mode<synchronous>, transform_indices = @transform_1, window_bounds = array<i64: 144, 128>}, {pipeline_mode = #tpu.pipeline_mode<synchronous>, transform_indices = @transform_2, window_bounds = array<i64: 1, 128>}, {transform_indices = @transform_3, window_bounds = array<i64: 64, 128>}]} {
    %c0 = arith.constant 0 : index
    %c0_0 = arith.constant 0 : index
    %0 = vector.load %arg1[%c0, %c0_0] : memref<64x144xbf16, #tpu.memory_space<vmem>>, vector<64x144xbf16>
    %c0_1 = arith.constant 0 : index
    %c0_2 = arith.constant 0 : index
    %1 = vector.load %arg2[%c0_1, %c0_2] : memref<144x128xbf16, #tpu.memory_space<vmem>>, vector<144x128xbf16>
    %cst = arith.constant dense<0.000000e+00> : vector<64x128xf32>
    %2 = tpu.matmul %0, %1, %cst {dimension_numbers = #tpu.dot_dimension_numbers<[1], [0], [0], [1], [0, 0, 1, 1], [], []>} : vector<64x144xbf16>, vector<144x128xbf16>, vector<64x128xf32> -> vector<64x128xf32>
    %c0_3 = arith.constant 0 : index
    %c0_4 = arith.constant 0 : index
    %3 = vector.load %arg3[%c0_3, %c0_4] : memref<1x128xf32, #tpu.memory_space<vmem>>, vector<1x128xf32>
    %4 = vector.broadcast %3 : vector<1x128xf32> to vector<64x128xf32>
    %5 = arith.addf %2, %4 : vector<64x128xf32>
    %cst_5 = arith.constant 0.000000e+00 : f32
    %6 = vector.broadcast %cst_5 : f32 to vector<64x128xf32>
    %7 = arith.maximumf %5, %6 : vector<64x128xf32>
    %c0_6 = arith.constant 0 : index
    %c0_7 = arith.constant 0 : index
    %8 = vector.load %arg4[%c0_6, %c0_7] : memref<64x128xf32, #tpu.memory_space<vmem>>, vector<64x128xf32>
    tpu.vector_store %arg4[%c0_6, %c0_7], %7 {strides = array<i32>} : memref<64x128xf32, #tpu.memory_space<vmem>>, vector<64x128xf32>,
    return
  }
  func.func @transform_0(%arg0: i32) -> (i32, i32) {
    %c0_i32 = arith.constant 0 : i32
    %c0_i32_0 = arith.constant 0 : i32
    return %arg0, %c0_i32 : i32, i32
  }
  func.func @transform_1(%arg0: i32) -> (i32, i32) {
    %c0_i32 = arith.constant 0 : i32
    %c0_i32_0 = arith.constant 0 : i32
    %c0_i32_1 = arith.constant 0 : i32
    return %c0_i32, %c0_i32_0 : i32, i32
  }
  func.func @transform_2(%arg0: i32) -> (i32, i32) {
    %c0_i32 = arith.constant 0 : i32
    %c0_i32_0 = arith.constant 0 : i32
    %c0_i32_1 = arith.constant 0 : i32
    return %c0_i32, %c0_i32_0 : i32, i32
  }
  func.func @transform_3(%arg0: i32) -> (i32, i32) {
    %c0_i32 = arith.constant 0 : i32
    %c0_i32_0 = arith.constant 0 : i32
    return %arg0, %c0_i32 : i32, i32
  }
}

</mosaic_0001>

<llo_original>
// kernel: conv2x_forward.2
$region0: #{conv2x_forward.2}
  #allocation0 [shape = 'u32[]', space=smem, size = 0x4, offset = 0x4, fixed_abs, tag = 'smem constant byte address 0x4 - core index']
  #allocation1 [shape = 'u32[72,128]{1,0:T(1,128)}', space=vmem, size = 0x9000, scoped, tag = 'internal scratch']
  %s0 = inlined_call_operand.vmem [shape: bf16[128,40], index: 0, kind: input, shape index: {}]
  %s1 = inlined_call_operand.vmem [shape: bf16[40,128], index: 1, kind: input, shape index: {}]
  %s2 = inlined_call_operand.vmem [shape: f32[1,128], index: 2, kind: input, shape index: {}]
  %s3 = inlined_call_operand.vmem [shape: bf16[128,128], index: 3, kind: output, shape index: {}]
  %s4 = sld [smem:[#allocation0]]
  $region45: #{conv2x_forward.2} parent=0
    _
  %s6 = ssub.s32 1, %s4
  %s7 = scalar_select 0, %s6, %s4
  loop: start=0, step=1, limit=4
  $region2: #{conv2x_forward.2} parent=0 // loop_pre_header
    _
  $region3: #{conv2x_forward.2} parent=0 // loop_header
    %s9 = sphi 0, %s13
    %p10 = scmp.ge.s32.totalorder %s9, 4
    %s19 = sphi 0, %s21
    %s22 = sphi 0, %s19
    %s23 = sphi 0, %s22
    %s39 = sphi 0, %s23
    %s43 = sphi 0, %s43
    %s45 = sphi 0, %s43
    %s46 = sphi 0, %s45
    %s60 = sphi 0, %s46
    %s64 = sphi 0, %s64
    %s66 = sphi 0, %s64
    %s67 = sphi 0, %s66
    %s81 = sphi 0, %s67
    %s87 = sphi 0, %s89
    %s90 = sphi 0, %s87
    %s91 = sphi 0, %s90
    %s107 = sphi 0, %s91
  $region4: #{conv2x_forward.2} parent=0 // loop_header_branch
    %12 = sbr.rel (%p10) target = $region8
  $region5: #{conv2x_forward.2} parent=0 // loop_body
    %s14 = ssub.s32 %s9, 1
    %s15 = ssub.s32 %s9, 2
    %s16 = sadd.s32 %s9, 1
    %s17 = ssub.s32 %s9, %s16
    %p18 = scmp.eq.s32.totalorder %s17, 0
    %s20 = sadd.s32 %s19, 1
    %s21 = scalar_select %p18, %s19, %s20
    %p24 = pneg %p18
    %p25 = scmp.eq.s32.totalorder %s9, 1
    %p26 = por %p24, %p25
    %p27 = scmp.ne.s32.totalorder %s19, %s22
    %p28 = scmp.eq.s32.totalorder %s9, 0
    %p29 = por %p27, %p28
    %p30 = scmp.ne.s32.totalorder %s19, %s22
    %p31 = scmp.eq.s32.totalorder %s14, 1
    %p32 = por %p30, %p31
    %p33 = scmp.ne.s32.totalorder %s22, %s23
    %p34 = scmp.eq.s32.totalorder %s14, 0
    %p35 = por %p33, %p34
    %p36 = scmp.ne.s32.totalorder %s22, %s23
    %p37 = scmp.eq.s32.totalorder %s15, 1
    %p38 = por %p36, %p37
    %p40 = scmp.ne.s32.totalorder %s23, %s39
    %p41 = scmp.eq.s32.totalorder %s15, 0
    %p42 = por %p40, %p41
    %s44 = sadd.s32 %s43, 1
    %p47 = scmp.eq.s32.totalorder %s9, 1
    %p48 = scmp.ne.s32.totalorder %s43, %s45
    %p49 = scmp.eq.s32.totalorder %s9, 0
    %p50 = por %p48, %p49
    %p51 = scmp.ne.s32.totalorder %s43, %s45
    %p52 = scmp.eq.s32.totalorder %s14, 1
    %p53 = por %p51, %p52
    %p54 = scmp.ne.s32.totalorder %s45, %s46
    %p55 = scmp.eq.s32.totalorder %s14, 0
    %p56 = por %p54, %p55
    %p57 = scmp.ne.s32.totalorder %s45, %s46
    %p58 = scmp.eq.s32.totalorder %s15, 1
    %p59 = por %p57, %p58
    %p61 = scmp.ne.s32.totalorder %s46, %s60
    %p62 = scmp.eq.s32.totalorder %s15, 0
    %p63 = por %p61, %p62
    %s65 = sadd.s32 %s64, 1
    %p68 = scmp.eq.s32.totalorder %s9, 1
    %p69 = scmp.ne.s32.totalorder %s64, %s66
    %p70 = scmp.eq.s32.totalorder %s9, 0
    %p71 = por %p69, %p70
    %p72 = scmp.ne.s32.totalorder %s64, %s66
    %p73 = scmp.eq.s32.totalorder %s14, 1
    %p74 = por %p72, %p73
    %p75 = scmp.ne.s32.totalorder %s66, %s67
    %p76 = scmp.eq.s32.totalorder %s14, 0
    %p77 = por %p75, %p76
    %p78 = scmp.ne.s32.totalorder %s66, %s67
    %p79 = scmp.eq.s32.totalorder %s15, 1
    %p80 = por %p78, %p79
    %p82 = scmp.ne.s32.totalorder %s67, %s81
    %p83 = scmp.eq.s32.totalorder %s15, 0
    %p84 = por %p82, %p83
    %s85 = ssub.s32 %s9, %s16
    %p86 = scmp.eq.s32.totalorder %s85, 0
    %s88 = sadd.s32 %s87, 1
    %s89 = scalar_select %p86, %s87, %s88
    %p92 = pneg %p86
    %p93 = scmp.eq.s32.totalorder %s9, 1
    %p94 = por %p92, %p93
    %p95 = scmp.ne.s32.totalorder %s87, %s90
    %p96 = scmp.eq.s32.totalorder %s9, 0
    %p97 = por %p95, %p96
    %p98 = scmp.ne.s32.totalorder %s87, %s90
    %p99 = scmp.eq.s32.totalorder %s14, 1
    %p100 = por %p98, %p99
    %p101 = scmp.ne.s32.totalorder %s90, %s91
    %p102 = scmp.eq.s32.totalorder %s14, 0
    %p103 = por %p101, %p102
    %p104 = scmp.ne.s32.totalorder %s90, %s91
    %p105 = scmp.eq.s32.totalorder %s15, 1
    %p106 = por %p104, %p105
    %p108 = scmp.ne.s32.totalorder %s91, %s107
    %p109 = scmp.eq.s32.totalorder %s15, 0
    %p110 = por %p108, %p109
    %p111 = scmp.le.s32.totalorder 1, %s9
    %p112 = scmp.lt.s32.totalorder %s9, 3
    %p113 = pnand %p111, %p112
    %p114 = pneg %p113
    // Predicated region
    $region9: #{conv2x_forward.2} parent=5 // pred_check
      _
    $region10: #{conv2x_forward.2} parent=5 // pred_check_branch
      %116 = sbr.rel (%p113) target = $region12
    $region11: #{conv2x_forward.2} parent=5 // pred_region
      %s117 = ssub.s32 %s9, 1
      // Predicated region
      $region13: #{conv2x_forward.2} parent=11 // pred_check
        %p118 = pneg %p56
      $region14: #{conv2x_forward.2} parent=11 // pred_check_branch
        %120 = sbr.rel (%p118) target = $region16
      $region15: #{conv2x_forward.2} parent=11 // pred_region
        _
      $region16: #{conv2x_forward.2} parent=11 // pred_fallthru
        _
      // Predicated region
      $region17: #{conv2x_forward.2} parent=11 // pred_check
        %p121 = pneg %p77
      $region18: #{conv2x_forward.2} parent=11 // pred_check_branch
        %123 = sbr.rel (%p121) target = $region20
      $region19: #{conv2x_forward.2} parent=11 // pred_region
        _
      $region20: #{conv2x_forward.2} parent=11 // pred_fallthru
        _
    $region12: #{conv2x_forward.2} parent=5 // pred_fallthru
      _
    %p124 = scmp.lt.s32.totalorder %s9, 2
    // Predicated region
    $region21: #{conv2x_forward.2} parent=5 // pred_check
      %p125 = pneg %p124
    $region22: #{conv2x_forward.2} parent=5 // pred_check_branch
      %127 = sbr.rel (%p125) target = $region24
    $region23: #{conv2x_forward.2} parent=5 // pred_region
      // Predicated region
      $region25: #{conv2x_forward.2} parent=23 // pred_check
        %p128 = pneg %p29
      $region26: #{conv2x_forward.2} parent=23 // pred_check_branch
        %130 = sbr.rel (%p128) target = $region28
      $region27: #{conv2x_forward.2} parent=23 // pred_region
        %s131 = smul.u32 8, %s9
        %p132 = scmp.lt.s32.totalorder %s131, 15
        %s133 = scalar_select %p132, %s131, 15
        %s134 = smul.addr %s133, 4
        %s135 = scalar_lea.vmem %s0, %s134
        %s136 = smul.u32 8, %s9
      $region28: #{conv2x_forward.2} parent=23 // pred_fallthru
        _
    $region24: #{conv2x_forward.2} parent=5 // pred_fallthru
      _
    %p137 = scmp.le.s32.totalorder 1, %s9
    %p138 = scmp.lt.s32.totalorder %s9, 3
    %p139 = pnand %p137, %p138
    %p140 = pneg %p139
    // Predicated region
    $region29: #{conv2x_forward.2} parent=5 // pred_check
      _
    $region30: #{conv2x_forward.2} parent=5 // pred_check_branch
      %142 = sbr.rel (%p139) target = $region32
    $region31: #{conv2x_forward.2} parent=5 // pred_region
      %s143 = ssub.s32 %s9, 1
      %s144 = smul.u32 8, %s14
      %p145 = scmp.lt.s32.totalorder %s144, 15
      %s146 = scalar_select %p145, %s144, 15
      %s147 = smul.addr %s146, 4
      %s148 = scalar_lea.vmem %s0, %s147
      %p149 = pneg %p35
      %p150 = pneg %p32
      %p151 = pneg %p56
      %p152 = pneg %p53
      %p153 = pneg %p77
      %p154 = pneg %p74
      %p155 = pneg %p103
      %p156 = pneg %p100
      %s157 = smul.u32 8, %s14
      %p158 = scmp.lt.s32.totalorder %s157, 15
      %s159 = scalar_select %p158, %s157, 15
      %s160 = smul.addr %s159, 4
      %s161 = scalar_lea.vmem %s3, %s160
      %s162 = smul.u32 8, %s14
      %p163 = scmp.lt.s32.totalorder %s162, 15
      %s164 = scalar_select %p163, %s162, 15
      %s165 = smul.addr %s164, 4
      %s166 = scalar_lea.vmem %s0, %s165
      %s167 = smul.u32 8, %s14
      %s168 = smul.u32 8, %s14
      %p169 = scmp.lt.s32.totalorder %s168, 15
      %s170 = scalar_select %p169, %s168, 15
      %s171 = smul.addr %s170, 4
      %s172 = scalar_lea.vmem %s3, %s171
      %s173 = smul.u32 8, %s14
      %v175 = vld [vmem:[%s166] sm:$0xf]
      %v176 = vld [vmem:[%s166 + $0x4] sm:$0xf]
      %v177 = vld [vmem:[%s166 + $0x8] sm:$0xf]
      %v178 = vld [vmem:[%s166 + $0xc] sm:$0xf]
      %v179 = vld [vmem:[%s166 + $0x10] sm:$0xf]
      %v180 = vld [vmem:[%s166 + $0x14] sm:$0xf]
      %v181 = vld [vmem:[%s166 + $0x18] sm:$0xf]
      %v182 = vld [vmem:[%s166 + $0x1c] sm:$0xf]
      %v183 = vld [vmem:[%s1] sm:$0xf]
      %v184 = vld [vmem:[%s1 + $0x4] sm:$0xf]
      %v185 = vld [vmem:[%s1 + $0x8] sm:$0xf]
      %v186 = vld [vmem:[%s1 + $0xc] sm:$0xf]
      %v187 = vld [vmem:[%s1 + $0x10] sm:$0xf]
      %v188 = vld [vmem:[%s2] sm:$0x1]
      %v190 = vperm.slane %v188, 0
      %v200 = vunpack.c.l.b16 %v175
      %v201 = vunpack.c.l.b16 %v176
      %v202 = vunpack.c.l.b16 %v177
      %v203 = vunpack.c.l.b16 %v178
      %v204 = vunpack.c.l.b16 %v179
      %v205 = vunpack.c.l.b16 %v180
      %v206 = vunpack.c.l.b16 %v181
      %v207 = vunpack.c.l.b16 %v182
      %v208 = vpack.c.b16 %v201, %v200
      %v209 = vpack.c.b16 %v203, %v202
      %v210 = vpack.c.b16 %v205, %v204
      %v211 = vpack.c.b16 %v207, %v206
      %v217 = vunpack.c.l.b16 %v183
      %v218 = vunpack.c.l.b16 %v184
      %v219 = vunpack.c.l.b16 %v185
      %v220 = vunpack.c.l.b16 %v186
      %v221 = vunpack.c.l.b16 %v187
      %v222 = vpack.c.b16 %v218, %v217
      %v223 = vpack.c.b16 %v220, %v219
      %v224 = vpack.c.b16 %v221, %v221
      %vm227 = vcmask 326656
      %v229 = vsel %vm227, %v208, 0
      %v232 = vsel %vm227, %v209, 0
      %v235 = vsel %vm227, %v210, 0
      %v238 = vsel %vm227, %v211, 0
      %vm240 = vcmask 1043456
      %v242 = vsel %vm240, %v224, 0
      %244 = vmatpush.bf16.msra.mxu0 0
      %245 = vmatpush.bf16.msra.mxu0 0
      %246 = vmatpush.bf16.msra.mxu0 0
      %247 = vmatpush.bf16.msra.mxu0 0
      %248 = vmatpush.bf16.msra.mxu0 0
      %249 = vmatpush.bf16.msra.mxu0 %v242
      %250 = vmatpush.bf16.msra.mxu0 %v223
      %251 = vmatpush.bf16.msra.mxu0 %v222
      %252 = vmatmul.bf16.gmra.mxu0 %v229
      %v253 = vpop.f32.mrf.mxu0
      %v254 = vadd.f32 %v190, %v253
      %v255 = vpop.f32.mrf.mxu0
      %v256 = vadd.f32 %v190, %v255
      %257 = vmatmul.bf16.gmra.mxu0 %v232
      %v258 = vpop.f32.mrf.mxu0
      %v259 = vadd.f32 %v190, %v258
      %v260 = vpop.f32.mrf.mxu0
      %v261 = vadd.f32 %v190, %v260
      %262 = vmatmul.bf16.gmra.mxu0 %v235
      %v263 = vpop.f32.mrf.mxu0
      %v264 = vadd.f32 %v190, %v263
      %v265 = vpop.f32.mrf.mxu0
      %v266 = vadd.f32 %v190, %v265
      %267 = vmatmul.bf16.gmra.mxu0 %v238
      %v268 = vpop.f32.mrf.mxu0
      %v269 = vadd.f32 %v190, %v268
      %v270 = vpop.f32.mrf.mxu0
      %v271 = vadd.f32 %v190, %v270
      %272 = vdwg.mxu0
      %v273 = vmax.f32 %v254, 0.0
      %v274 = vmax.f32 %v256, 0.0
      %v275 = vmax.f32 %v259, 0.0
      %v276 = vmax.f32 %v261, 0.0
      %v277 = vmax.f32 %v264, 0.0
      %v278 = vmax.f32 %v266, 0.0
      %v279 = vmax.f32 %v269, 0.0
      %v280 = vmax.f32 %v271, 0.0
      %v281 = vpack.c.bf16 %v273, %v273
      %v282 = vpack.c.bf16 %v274, %v274
      %v283 = vpack.c.bf16 %v275, %v275
      %v284 = vpack.c.bf16 %v276, %v276
      %v285 = vpack.c.bf16 %v277, %v277
      %v286 = vpack.c.bf16 %v278, %v278
      %v287 = vpack.c.bf16 %v279, %v279
      %v288 = vpack.c.bf16 %v280, %v280
      %289 = vst [vmem:[%s172] sm:$0xf] %v281
      %290 = vst [vmem:[%s172 + $0x4] sm:$0xf] %v282
      %291 = vst [vmem:[%s172 + $0x8] sm:$0xf] %v283
      %292 = vst [vmem:[%s172 + $0xc] sm:$0xf] %v284
      %293 = vst [vmem:[%s172 + $0x10] sm:$0xf] %v285
      %294 = vst [vmem:[%s172 + $0x14] sm:$0xf] %v286
      %295 = vst [vmem:[%s172 + $0x18] sm:$0xf] %v287
      %296 = vst [vmem:[%s172 + $0x1c] sm:$0xf] %v288
      %s297 = smul.u32 8, %s14
      %p298 = scmp.lt.s32.totalorder %s297, 15
      %s299 = scalar_select %p298, %s297, 15
      %s300 = smul.addr %s299, 4
      %s301 = scalar_lea.vmem %s3, %s300
      // Predicated region
      $region33: #{conv2x_forward.2} parent=31 // pred_check
        %p302 = pneg %p100
      $region34: #{conv2x_forward.2} parent=31 // pred_check_branch
        %304 = sbr.rel (%p302) target = $region36
      $region35: #{conv2x_forward.2} parent=31 // pred_region
        %s305 = smul.u32 8, %s14
      $region36: #{conv2x_forward.2} parent=31 // pred_fallthru
        _
    $region32: #{conv2x_forward.2} parent=5 // pred_fallthru
      _
    %p306 = scmp.le.s32.totalorder 2, %s9
    // Predicated region
    $region37: #{conv2x_forward.2} parent=5 // pred_check
      %p307 = pneg %p306
    $region38: #{conv2x_forward.2} parent=5 // pred_check_branch
      %309 = sbr.rel (%p307) target = $region40
    $region39: #{conv2x_forward.2} parent=5 // pred_region
      %s310 = ssub.s32 %s9, 2
      // Predicated region
      $region41: #{conv2x_forward.2} parent=39 // pred_check
        %p311 = pneg %p106
      $region42: #{conv2x_forward.2} parent=39 // pred_check_branch
        %313 = sbr.rel (%p311) target = $region44
      $region43: #{conv2x_forward.2} parent=39 // pred_region
        %s314 = smul.u32 8, %s15
        %p315 = scmp.lt.s32.totalorder %s314, 15
        %s316 = scalar_select %p315, %s314, 15
        %s317 = smul.addr %s316, 4
        %s318 = scalar_lea.vmem %s3, %s317
      $region44: #{conv2x_forward.2} parent=39 // pred_fallthru
        _
    $region40: #{conv2x_forward.2} parent=5 // pred_fallthru
      _
  $region6: #{conv2x_forward.2} parent=0 // loop_footer
    %s13 = sadd.s32 1, %s9
  $region7: #{conv2x_forward.2} parent=0 // loop_footer_branch
    %8 = sbr.rel target = $region3
  $region8: #{conv2x_forward.2} parent=0 // loop_exit
    _

// kernel: conv2x_forward.3
$region0: #{conv2x_forward.3}
  #allocation0 [shape = 'u32[]', space=smem, size = 0x4, offset = 0x4, fixed_abs, tag = 'smem constant byte address 0x4 - core index']
  #allocation1 [shape = 'u32[72,128]{1,0:T(1,128)}', space=vmem, size = 0x9000, scoped, tag = 'internal scratch']
  %s0 = inlined_call_operand.vmem [shape: bf16[128,144], index: 0, kind: input, shape index: {}]
  %s1 = inlined_call_operand.vmem [shape: bf16[144,128], index: 1, kind: input, shape index: {}]
  %s2 = inlined_call_operand.vmem [shape: f32[1,128], index: 2, kind: input, shape index: {}]
  %s3 = inlined_call_operand.vmem [shape: f32[128,128], index: 3, kind: output, shape index: {}]
  %s4 = sld [smem:[#allocation0]]
  $region45: #{conv2x_forward.3} parent=0
    _
  %s6 = ssub.s32 1, %s4
  %s7 = scalar_select 0, %s6, %s4
  loop: start=0, step=1, limit=4
  $region2: #{conv2x_forward.3} parent=0 // loop_pre_header
    _
  $region3: #{conv2x_forward.3} parent=0 // loop_header
    %s9 = sphi 0, %s13
    %p10 = scmp.ge.s32.totalorder %s9, 4
    %s19 = sphi 0, %s21
    %s22 = sphi 0, %s19
    %s23 = sphi 0, %s22
    %s39 = sphi 0, %s23
    %s43 = sphi 0, %s43
    %s45 = sphi 0, %s43
    %s46 = sphi 0, %s45
    %s60 = sphi 0, %s46
    %s64 = sphi 0, %s64
    %s66 = sphi 0, %s64
    %s67 = sphi 0, %s66
    %s81 = sphi 0, %s67
    %s87 = sphi 0, %s89
    %s90 = sphi 0, %s87
    %s91 = sphi 0, %s90
    %s107 = sphi 0, %s91
  $region4: #{conv2x_forward.3} parent=0 // loop_header_branch
    %12 = sbr.rel (%p10) target = $region8
  $region5: #{conv2x_forward.3} parent=0 // loop_body
    %s14 = ssub.s32 %s9, 1
    %s15 = ssub.s32 %s9, 2
    %s16 = sadd.s32 %s9, 1
    %s17 = ssub.s32 %s9, %s16
    %p18 = scmp.eq.s32.totalorder %s17, 0
    %s20 = sadd.s32 %s19, 1
    %s21 = scalar_select %p18, %s19, %s20
    %p24 = pneg %p18
    %p25 = scmp.eq.s32.totalorder %s9, 1
    %p26 = por %p24, %p25
    %p27 = scmp.ne.s32.totalorder %s19, %s22
    %p28 = scmp.eq.s32.totalorder %s9, 0
    %p29 = por %p27, %p28
    %p30 = scmp.ne.s32.totalorder %s19, %s22
    %p31 = scmp.eq.s32.totalorder %s14, 1
    %p32 = por %p30, %p31
    %p33 = scmp.ne.s32.totalorder %s22, %s23
    %p34 = scmp.eq.s32.totalorder %s14, 0
    %p35 = por %p33, %p34
    %p36 = scmp.ne.s32.totalorder %s22, %s23
    %p37 = scmp.eq.s32.totalorder %s15, 1
    %p38 = por %p36, %p37
    %p40 = scmp.ne.s32.totalorder %s23, %s39
    %p41 = scmp.eq.s32.totalorder %s15, 0
    %p42 = por %p40, %p41
    %s44 = sadd.s32 %s43, 1
    %p47 = scmp.eq.s32.totalorder %s9, 1
    %p48 = scmp.ne.s32.totalorder %s43, %s45
    %p49 = scmp.eq.s32.totalorder %s9, 0
    %p50 = por %p48, %p49
    %p51 = scmp.ne.s32.totalorder %s43, %s45
    %p52 = scmp.eq.s32.totalorder %s14, 1
    %p53 = por %p51, %p52
    %p54 = scmp.ne.s32.totalorder %s45, %s46
    %p55 = scmp.eq.s32.totalorder %s14, 0
    %p56 = por %p54, %p55
    %p57 = scmp.ne.s32.totalorder %s45, %s46
    %p58 = scmp.eq.s32.totalorder %s15, 1
    %p59 = por %p57, %p58
    %p61 = scmp.ne.s32.totalorder %s46, %s60
    %p62 = scmp.eq.s32.totalorder %s15, 0
    %p63 = por %p61, %p62
    %s65 = sadd.s32 %s64, 1
    %p68 = scmp.eq.s32.totalorder %s9, 1
    %p69 = scmp.ne.s32.totalorder %s64, %s66
    %p70 = scmp.eq.s32.totalorder %s9, 0
    %p71 = por %p69, %p70
    %p72 = scmp.ne.s32.totalorder %s64, %s66
    %p73 = scmp.eq.s32.totalorder %s14, 1
    %p74 = por %p72, %p73
    %p75 = scmp.ne.s32.totalorder %s66, %s67
    %p76 = scmp.eq.s32.totalorder %s14, 0
    %p77 = por %p75, %p76
    %p78 = scmp.ne.s32.totalorder %s66, %s67
    %p79 = scmp.eq.s32.totalorder %s15, 1
    %p80 = por %p78, %p79
    %p82 = scmp.ne.s32.totalorder %s67, %s81
    %p83 = scmp.eq.s32.totalorder %s15, 0
    %p84 = por %p82, %p83
    %s85 = ssub.s32 %s9, %s16
    %p86 = scmp.eq.s32.totalorder %s85, 0
    %s88 = sadd.s32 %s87, 1
    %s89 = scalar_select %p86, %s87, %s88
    %p92 = pneg %p86
    %p93 = scmp.eq.s32.totalorder %s9, 1
    %p94 = por %p92, %p93
    %p95 = scmp.ne.s32.totalorder %s87, %s90
    %p96 = scmp.eq.s32.totalorder %s9, 0
    %p97 = por %p95, %p96
    %p98 = scmp.ne.s32.totalorder %s87, %s90
    %p99 = scmp.eq.s32.totalorder %s14, 1
    %p100 = por %p98, %p99
    %p101 = scmp.ne.s32.totalorder %s90, %s91
    %p102 = scmp.eq.s32.totalorder %s14, 0
    %p103 = por %p101, %p102
    %p104 = scmp.ne.s32.totalorder %s90, %s91
    %p105 = scmp.eq.s32.totalorder %s15, 1
    %p106 = por %p104, %p105
    %p108 = scmp.ne.s32.totalorder %s91, %s107
    %p109 = scmp.eq.s32.totalorder %s15, 0
    %p110 = por %p108, %p109
    %p111 = scmp.le.s32.totalorder 1, %s9
    %p112 = scmp.lt.s32.totalorder %s9, 3
    %p113 = pnand %p111, %p112
    %p114 = pneg %p113
    // Predicated region
    $region9: #{conv2x_forward.3} parent=5 // pred_check
      _
    $region10: #{conv2x_forward.3} parent=5 // pred_check_branch
      %116 = sbr.rel (%p113) target = $region12
    $region11: #{conv2x_forward.3} parent=5 // pred_region
      %s117 = ssub.s32 %s9, 1
      // Predicated region
      $region13: #{conv2x_forward.3} parent=11 // pred_check
        %p118 = pneg %p56
      $region14: #{conv2x_forward.3} parent=11 // pred_check_branch
        %120 = sbr.rel (%p118) target = $region16
      $region15: #{conv2x_forward.3} parent=11 // pred_region
        _
      $region16: #{conv2x_forward.3} parent=11 // pred_fallthru
        _
      // Predicated region
      $region17: #{conv2x_forward.3} parent=11 // pred_check
        %p121 = pneg %p77
      $region18: #{conv2x_forward.3} parent=11 // pred_check_branch
        %123 = sbr.rel (%p121) target = $region20
      $region19: #{conv2x_forward.3} parent=11 // pred_region
        _
      $region20: #{conv2x_forward.3} parent=11 // pred_fallthru
        _
    $region12: #{conv2x_forward.3} parent=5 // pred_fallthru
      _
    %p124 = scmp.lt.s32.totalorder %s9, 2
    // Predicated region
    $region21: #{conv2x_forward.3} parent=5 // pred_check
      %p125 = pneg %p124
    $region22: #{conv2x_forward.3} parent=5 // pred_check_branch
      %127 = sbr.rel (%p125) target = $region24
    $region23: #{conv2x_forward.3} parent=5 // pred_region
      // Predicated region
      $region25: #{conv2x_forward.3} parent=23 // pred_check
        %p128 = pneg %p29
      $region26: #{conv2x_forward.3} parent=23 // pred_check_branch
        %130 = sbr.rel (%p128) target = $region28
      $region27: #{conv2x_forward.3} parent=23 // pred_region
        %s131 = smul.u32 8, %s9
        %p132 = scmp.lt.s32.totalorder %s131, 15
        %s133 = scalar_select %p132, %s131, 15
        %s134 = smul.addr %s133, 2
        %s135 = smul.addr %s134, 4
        %s136 = scalar_lea.vmem %s0, %s135
        %s137 = smul.u32 8, %s9
      $region28: #{conv2x_forward.3} parent=23 // pred_fallthru
        _
    $region24: #{conv2x_forward.3} parent=5 // pred_fallthru
      _
    %p138 = scmp.le.s32.totalorder 1, %s9
    %p139 = scmp.lt.s32.totalorder %s9, 3
    %p140 = pnand %p138, %p139
    %p141 = pneg %p140
    // Predicated region
    $region29: #{conv2x_forward.3} parent=5 // pred_check
      _
    $region30: #{conv2x_forward.3} parent=5 // pred_check_branch
      %143 = sbr.rel (%p140) target = $region32
    $region31: #{conv2x_forward.3} parent=5 // pred_region
      %s144 = ssub.s32 %s9, 1
      %s145 = smul.u32 8, %s14
      %p146 = scmp.lt.s32.totalorder %s145, 15
      %s147 = scalar_select %p146, %s145, 15
      %s148 = smul.addr %s147, 2
      %s149 = smul.addr %s148, 4
      %s150 = scalar_lea.vmem %s0, %s149
      %p151 = pneg %p35
      %p152 = pneg %p32
      %p153 = pneg %p56
      %p154 = pneg %p53
      %p155 = pneg %p77
      %p156 = pneg %p74
      %p157 = pneg %p103
      %p158 = pneg %p100
      %s159 = smul.u32 8, %s14
      %p160 = scmp.lt.s32.totalorder %s159, 15
      %s161 = scalar_select %p160, %s159, 15
      %s162 = smul.addr %s161, 8
      %s163 = scalar_lea.vmem %s3, %s162
      %s164 = smul.u32 8, %s14
      %p165 = scmp.lt.s32.totalorder %s164, 15
      %s166 = scalar_select %p165, %s164, 15
      %s167 = smul.addr %s166, 2
      %s168 = smul.addr %s167, 4
      %s169 = scalar_lea.vmem %s0, %s168
      %s170 = smul.u32 8, %s14
      %s171 = smul.u32 8, %s14
      %p172 = scmp.lt.s32.totalorder %s171, 15
      %s173 = scalar_select %p172, %s171, 15
      %s174 = smul.addr %s173, 8
      %s175 = scalar_lea.vmem %s3, %s174
      %s176 = smul.u32 8, %s14
      %v178 = vld [vmem:[%s169] sm:$0xff]
      %v179 = vld [vmem:[%s169 + $0x8] sm:$0xff]
      %v180 = vld [vmem:[%s169 + $0x10] sm:$0xff]
      %v181 = vld [vmem:[%s169 + $0x18] sm:$0xff]
      %v182 = vld [vmem:[%s169 + $0x20] sm:$0xff]
      %v183 = vld [vmem:[%s169 + $0x28] sm:$0xff]
      %v184 = vld [vmem:[%s169 + $0x30] sm:$0xff]
      %v185 = vld [vmem:[%s169 + $0x38] sm:$0xff]
      %v186 = vld [vmem:[%s1] sm:$0xf]
      %v187 = vld [vmem:[%s1 + $0x4] sm:$0xf]
      %v188 = vld [vmem:[%s1 + $0x8] sm:$0xf]
      %v189 = vld [vmem:[%s1 + $0xc] sm:$0xf]
      %v190 = vld [vmem:[%s1 + $0x10] sm:$0xf]
      %v191 = vld [vmem:[%s1 + $0x14] sm:$0xf]
      %v192 = vld [vmem:[%s1 + $0x18] sm:$0xf]
      %v193 = vld [vmem:[%s1 + $0x1c] sm:$0xf]
      %v194 = vld [vmem:[%s1 + $0x20] sm:$0xf]
      %v195 = vld [vmem:[%s1 + $0x24] sm:$0xf]
      %v196 = vld [vmem:[%s1 + $0x28] sm:$0xf]
      %v197 = vld [vmem:[%s1 + $0x2c] sm:$0xf]
      %v198 = vld [vmem:[%s1 + $0x30] sm:$0xf]
      %v199 = vld [vmem:[%s1 + $0x34] sm:$0xf]
      %v200 = vld [vmem:[%s1 + $0x38] sm:$0xf]
      %v201 = vld [vmem:[%s1 + $0x3c] sm:$0xf]
      %v202 = vld [vmem:[%s1 + $0x40] sm:$0xf]
      %v203 = vld [vmem:[%s1 + $0x44] sm:$0xf]
      %v204 = vld [vmem:[%s2] sm:$0x1]
      %v206 = vperm.slane %v204, 0
      %v216 = vunpack.c.l.b16 %v178
      %v217 = vunpack.c.h.b16 %v178
      %v218 = vunpack.c.l.b16 %v179
      %v219 = vunpack.c.h.b16 %v179
      %v220 = vunpack.c.l.b16 %v180
      %v221 = vunpack.c.h.b16 %v180
      %v222 = vunpack.c.l.b16 %v181
      %v223 = vunpack.c.h.b16 %v181
      %v224 = vunpack.c.l.b16 %v182
      %v225 = vunpack.c.h.b16 %v182
      %v226 = vunpack.c.l.b16 %v183
      %v227 = vunpack.c.h.b16 %v183
      %v228 = vunpack.c.l.b16 %v184
      %v229 = vunpack.c.h.b16 %v184
      %v230 = vunpack.c.l.b16 %v185
      %v231 = vunpack.c.h.b16 %v185
      %v232 = vpack.c.b16 %v218, %v216
      %v233 = vpack.c.b16 %v219, %v217
      %v234 = vpack.c.b16 %v222, %v220
      %v235 = vpack.c.b16 %v223, %v221
      %v236 = vpack.c.b16 %v226, %v224
      %v237 = vpack.c.b16 %v227, %v225
      %v238 = vpack.c.b16 %v230, %v228
      %v239 = vpack.c.b16 %v231, %v229
      %v262 = vunpack.c.l.b16 %v186
      %v263 = vunpack.c.l.b16 %v187
      %v264 = vunpack.c.l.b16 %v188
      %v265 = vunpack.c.l.b16 %v189
      %v266 = vunpack.c.l.b16 %v190
      %v267 = vunpack.c.l.b16 %v191
      %v268 = vunpack.c.l.b16 %v192
      %v269 = vunpack.c.l.b16 %v193
      %v270 = vunpack.c.l.b16 %v194
      %v271 = vunpack.c.l.b16 %v195
      %v272 = vunpack.c.l.b16 %v196
      %v273 = vunpack.c.l.b16 %v197
      %v274 = vunpack.c.l.b16 %v198
      %v275 = vunpack.c.l.b16 %v199
      %v276 = vunpack.c.l.b16 %v200
      %v277 = vunpack.c.l.b16 %v201
      %v278 = vunpack.c.l.b16 %v202
      %v279 = vunpack.c.l.b16 %v203
      %v280 = vpack.c.b16 %v263, %v262
      %v281 = vpack.c.b16 %v265, %v264
      %v282 = vpack.c.b16 %v267, %v266
      %v283 = vpack.c.b16 %v269, %v268
      %v284 = vpack.c.b16 %v271, %v270
      %v285 = vpack.c.b16 %v273, %v272
      %v286 = vpack.c.b16 %v275, %v274
      %v287 = vpack.c.b16 %v277, %v276
      %v288 = vpack.c.b16 %v279, %v278
      %vm298 = vcmask 130048
      %v300 = vsel %vm298, %v233, 0
      %v303 = vsel %vm298, %v235, 0
      %v306 = vsel %vm298, %v237, 0
      %v309 = vsel %vm298, %v239, 0
      %311 = vmatpush.bf16.msra.mxu0 %v287
      %312 = vmatpush.bf16.msra.mxu0 %v286
      %313 = vmatpush.bf16.msra.mxu0 %v285
      %314 = vmatpush.bf16.msra.mxu0 %v284
      %315 = vmatpush.bf16.msra.mxu0 %v283
      %316 = vmatpush.bf16.msra.mxu0 %v282
      %317 = vmatpush.bf16.msra.mxu0 %v281
      %318 = vmatpush.bf16.msra.mxu0 %v280
      %319 = vmatmul.bf16.gmra.mxu0 %v232
      %v320 = vpop.f32.mrf.mxu0
      %v321 = vadd.f32 %v206, %v320
      %v322 = vpop.f32.mrf.mxu0
      %v323 = vadd.f32 %v206, %v322
      %324 = vmatmul.bf16.gmra.mxu0 %v234
      %v325 = vpop.f32.mrf.mxu0
      %v326 = vadd.f32 %v206, %v325
      %v327 = vpop.f32.mrf.mxu0
      %v328 = vadd.f32 %v206, %v327
      %329 = vmatmul.bf16.gmra.mxu0 %v236
      %v330 = vpop.f32.mrf.mxu0
      %v331 = vadd.f32 %v206, %v330
      %v332 = vpop.f32.mrf.mxu0
      %v333 = vadd.f32 %v206, %v332
      %334 = vmatmul.bf16.gmra.mxu0 %v238
      %v335 = vpop.f32.mrf.mxu0
      %v336 = vadd.f32 %v206, %v335
      %v337 = vpop.f32.mrf.mxu0
      %v338 = vadd.f32 %v206, %v337
      %339 = vdwg.mxu0
      %340 = vmatpush.bf16.msra.mxu0 0
      %341 = vmatpush.bf16.msra.mxu0 0
      %342 = vmatpush.bf16.msra.mxu0 0
      %343 = vmatpush.bf16.msra.mxu0 0
      %344 = vmatpush.bf16.msra.mxu0 0
      %345 = vmatpush.bf16.msra.mxu0 0
      %346 = vmatpush.bf16.msra.mxu0 0
      %347 = vmatpush.bf16.msra.mxu0 %v288
      %348 = vmatmul.bf16.gmra.mxu0 %v300
      %v349 = vpop.f32.mrf.mxu0
      %v350 = vadd.f32 %v321, %v349
      %v351 = vpop.f32.mrf.mxu0
      %v352 = vadd.f32 %v323, %v351
      %353 = vmatmul.bf16.gmra.mxu0 %v303
      %v354 = vpop.f32.mrf.mxu0
      %v355 = vadd.f32 %v326, %v354
      %v356 = vpop.f32.mrf.mxu0
      %v357 = vadd.f32 %v328, %v356
      %358 = vmatmul.bf16.gmra.mxu0 %v306
      %v359 = vpop.f32.mrf.mxu0
      %v360 = vadd.f32 %v331, %v359
      %v361 = vpop.f32.mrf.mxu0
      %v362 = vadd.f32 %v333, %v361
      %363 = vmatmul.bf16.gmra.mxu0 %v309
      %v364 = vpop.f32.mrf.mxu0
      %v365 = vadd.f32 %v336, %v364
      %v366 = vpop.f32.mrf.mxu0
      %v367 = vadd.f32 %v338, %v366
      %368 = vdwg.mxu0
      %v369 = vmax.f32 %v350, 0.0
      %v370 = vmax.f32 %v352, 0.0
      %v371 = vmax.f32 %v355, 0.0
      %v372 = vmax.f32 %v357, 0.0
      %v373 = vmax.f32 %v360, 0.0
      %v374 = vmax.f32 %v362, 0.0
      %v375 = vmax.f32 %v365, 0.0
      %v376 = vmax.f32 %v367, 0.0
      %377 = vst [vmem:[%s175] sm:$0xff] %v369
      %378 = vst [vmem:[%s175 + $0x8] sm:$0xff] %v370
      %379 = vst [vmem:[%s175 + $0x10] sm:$0xff] %v371
      %380 = vst [vmem:[%s175 + $0x18] sm:$0xff] %v372
      %381 = vst [vmem:[%s175 + $0x20] sm:$0xff] %v373
      %382 = vst [vmem:[%s175 + $0x28] sm:$0xff] %v374
      %383 = vst [vmem:[%s175 + $0x30] sm:$0xff] %v375
      %384 = vst [vmem:[%s175 + $0x38] sm:$0xff] %v376
      %s385 = smul.u32 8, %s14
      %p386 = scmp.lt.s32.totalorder %s385, 15
      %s387 = scalar_select %p386, %s385, 15
      %s388 = smul.addr %s387, 8
      %s389 = scalar_lea.vmem %s3, %s388
      // Predicated region
      $region33: #{conv2x_forward.3} parent=31 // pred_check
        %p390 = pneg %p100
      $region34: #{conv2x_forward.3} parent=31 // pred_check_branch
        %392 = sbr.rel (%p390) target = $region36
      $region35: #{conv2x_forward.3} parent=31 // pred_region
        %s393 = smul.u32 8, %s14
      $region36: #{conv2x_forward.3} parent=31 // pred_fallthru
        _
    $region32: #{conv2x_forward.3} parent=5 // pred_fallthru
      _
    %p394 = scmp.le.s32.totalorder 2, %s9
    // Predicated region
    $region37: #{conv2x_forward.3} parent=5 // pred_check
      %p395 = pneg %p394
    $region38: #{conv2x_forward.3} parent=5 // pred_check_branch
      %397 = sbr.rel (%p395) target = $region40
    $region39: #{conv2x_forward.3} parent=5 // pred_region
      %s398 = ssub.s32 %s9, 2
      // Predicated region
      $region41: #{conv2x_forward.3} parent=39 // pred_check
        %p399 = pneg %p106
      $region42: #{conv2x_forward.3} parent=39 // pred_check_branch
        %401 = sbr.rel (%p399) target = $region44
      $region43: #{conv2x_forward.3} parent=39 // pred_region
        %s402 = smul.u32 8, %s15
        %p403 = scmp.lt.s32.totalorder %s402, 15
        %s404 = scalar_select %p403, %s402, 15
        %s405 = smul.addr %s404, 8
        %s406 = scalar_lea.vmem %s3, %s405
      $region44: #{conv2x_forward.3} parent=39 // pred_fallthru
        _
    $region40: #{conv2x_forward.3} parent=5 // pred_fallthru
      _
  $region6: #{conv2x_forward.3} parent=0 // loop_footer
    %s13 = sadd.s32 1, %s9
  $region7: #{conv2x_forward.3} parent=0 // loop_footer_branch
    %8 = sbr.rel target = $region3
  $region8: #{conv2x_forward.3} parent=0 // loop_exit
    _

</llo_original>
